<compile_context>
chip_gen: v5e
topology: v5e:2x2
jax: 0.10.0
libtpu: 0.0.40
codegen_flags: <defaults>
</compile_context>

<pallas_src>
import functools

import jax
import jax.numpy as jnp
from jax.experimental import pallas as pl
from jax.experimental.pallas import tpu as pltpu


def _round_up(n, m):
    return (n + m - 1) // m * m


# Footprint targets (bytes). Conservative for v7x's 64 MiB VMEM while still in
# the ~8-32 MiB block sweet spot that reaches ~85% of HBM roofline on v6e.
_TARGET_FOOTPRINT = 16 << 20      # goal for the 4-buffer (2*in + 2*out) footprint
_MAX_FUSED_FOOTPRINT = 28 << 20   # above this per single row -> T-tiled fallback
_VMEM_FLOOR = 16 << 20
_VMEM_CAP = 48 << 20              # ~0.75x v7x physical VMEM; safe on v5e/v6e too


# ----------------------------------------------------------------------------
# Fused kernel: squeeze -> MLP -> scale, one (BB, C, T) block per grid step.
# ----------------------------------------------------------------------------
def _se_fused_kernel(x_ref, w1_ref, b1_ref, w2_ref, b2_ref, o_ref, *, inv_t):
    # Squeeze: mean over time, accumulated in f32 without materializing an f32
    # copy of the whole tile.
    sq = jnp.sum(x_ref[...], axis=2, dtype=jnp.float32) * inv_t          # (BB, C)

    # Excitation MLP (tiny; kept in f32).
    h = jnp.maximum(
        jnp.dot(sq, w1_ref[...], preferred_element_type=jnp.float32) + b1_ref[...],
        0.0)                                                             # (BB, Cr)
    s = jax.nn.sigmoid(
        jnp.dot(h, w2_ref[...], preferred_element_type=jnp.float32) + b2_ref[...])

    # Channel-wise scaling in the input's native dtype (bf16 stays bf16 on
    # v6e/v7x); straight multiply -> store, no intermediate buffer.
    o_ref[...] = x_ref[...] * s[:, :, None].astype(o_ref.dtype)


# ----------------------------------------------------------------------------
# Two-pass fallback kernels (used when one batch row would not fit VMEM).
# ----------------------------------------------------------------------------
def _mean_kernel(x_ref, sq_ref, *, inv_t, t_tile, t_total, mask_tail):
    t = pl.program_id(1)

    @pl.when(t == 0)
    def _():
        sq_ref[...] = jnp.zeros_like(sq_ref)

    x = x_ref[...]
    if mask_tail:
        # Last T tile is ragged: the padded region of the block is undefined,
        # mask it out of the reduction.
        col = jax.lax.broadcasted_iota(jnp.int32, x.shape, 2) + t * t_tile
        x = jnp.where(col < t_total, x, jnp.zeros_like(x))
    sq_ref[...] += jnp.sum(x, axis=2, keepdims=True, dtype=jnp.float32)

    @pl.when(t == pl.num_programs(1) - 1)
    def _():
        sq_ref[...] *= inv_t


def _scale_kernel(sq_ref, w1_ref, b1_ref, w2_ref, b2_ref, x_ref, o_ref):
    # Recompute the tiny MLP per (b, t) step (negligible vs. the tile multiply).
    sq = sq_ref[...][:, :, 0]                                            # (1, C)
    h = jnp.maximum(
        jnp.dot(sq, w1_ref[...], preferred_element_type=jnp.float32) + b1_ref[...],
        0.0)
    s = jax.nn.sigmoid(
        jnp.dot(h, w2_ref[...], preferred_element_type=jnp.float32) + b2_ref[...])
    o_ref[...] = x_ref[...] * s[:, :, None].astype(o_ref.dtype)


# ----------------------------------------------------------------------------
# Wrapper
# ----------------------------------------------------------------------------
def channel_se_layer(x, fc1_w, fc1_b, fc2_w, fc2_b, *,
                     force_tiled=False, t_tile=None):
    """SE layer forward. x: (B, C, T).

    fc1_w: (C, C//r), fc1_b: (C//r,), fc2_w: (C//r, C), fc2_b: (C,).
    Weights are stored transposed relative to torch.nn.Linear ((in, out)), so
    `x @ W + b` here equals torch's `x @ W.T + b`.
    """
    B, C, T = x.shape
    Cr = fc1_w.shape[1]
    assert fc1_w.shape == (C, Cr) and fc2_w.shape == (Cr, C)
    assert fc1_b.shape == (Cr,) and fc2_b.shape == (C,)

    w1 = fc1_w.astype(jnp.float32)
    b1 = fc1_b.reshape(1, Cr).astype(jnp.float32)
    w2 = fc2_w.astype(jnp.float32)
    b2 = fc2_b.reshape(1, C).astype(jnp.float32)
    w_bytes = 4 * (w1.size + b1.size + w2.size + b2.size)

    itemsize = x.dtype.itemsize
    sub = max(8, 32 // itemsize)                      # sublane packing factor
    cp = _round_up(C, sub)
    row_bytes = cp * _round_up(T, 128) * itemsize      # one batch row, VMEM-tiled
    inv_t = 1.0 / float(T)

    use_tiled = force_tiled or (4 * row_bytes > _MAX_FUSED_FOOTPRINT)

    # ------------------------------------------------------------------ fused
    if not use_tiled:
        bb = max(1, _TARGET_FOOTPRINT // (4 * row_bytes))
        bb = min(bb, B)
        if B >= 2:
            # Keep >= 2 grid steps so v7x's two TensorCores both get work.
            bb = min(bb, pl.cdiv(B, 2))
        nb = pl.cdiv(B, bb)

        vmem_limit = int(min(max(4 * bb * row_bytes + 2 * w_bytes + (2 << 20),
                                 _VMEM_FLOOR), _VMEM_CAP))
        cost = pl.CostEstimate(
            flops=int(B * (4 * C * Cr + 2 * C * T)),
            transcendentals=int(B * C),
            bytes_accessed=int(2 * B * C * T * itemsize + w_bytes),
        )

        kernel = functools.partial(_se_fused_kernel, inv_t=inv_t)
        return pl.pallas_call(
            kernel,
            out_shape=jax.ShapeDtypeStruct((B, C, T), x.dtype),
            grid=(nb,),
            in_specs=[
                pl.BlockSpec((bb, C, T), lambda b: (b, 0, 0)),
                pl.BlockSpec((C, Cr), lambda b: (0, 0)),   # constant -> resident
                pl.BlockSpec((1, Cr), lambda b: (0, 0)),
                pl.BlockSpec((Cr, C), lambda b: (0, 0)),
                pl.BlockSpec((1, C), lambda b: (0, 0)),
            ],
            out_specs=pl.BlockSpec((bb, C, T), lambda b: (b, 0, 0)),
            compiler_params=pltpu.CompilerParams(
                dimension_semantics=("parallel",),
                vmem_limit_bytes=vmem_limit,
            ),
            cost_estimate=cost,
        )(x, w1, b1, w2, b2)

    # ----------------------------------------------------- two-pass T-tiled
    # Pass 1: streamed mean over T tiles -> (B, C, 1) f32 squeeze.
    # Pass 2: streamed MLP + scale over the same T tiles.
    if t_tile is None:
        tt = max(128, (_TARGET_FOOTPRINT // (4 * cp * itemsize)) // 128 * 128)
    else:
        tt = int(t_tile)
    if tt >= T:
        tt = T                       # full-T block (always layout-legal)
    nt = pl.cdiv(T, tt)
    mask_tail = (tt < T) and (T % tt != 0)

    vmem_limit = int(min(max(4 * cp * _round_up(tt, 128) * itemsize
                             + 2 * w_bytes + (2 << 20), _VMEM_FLOOR), _VMEM_CAP))
    # TODO(synk): if C is ever so large that a single (C, 128)-lane tile blows
    # past VMEM, add channel tiling to the reduction pass as well.

    mean_kernel = functools.partial(_mean_kernel, inv_t=inv_t, t_tile=tt,
                                    t_total=T, mask_tail=mask_tail)
    squeeze = pl.pallas_call(
        mean_kernel,
        out_shape=jax.ShapeDtypeStruct((B, C, 1), jnp.float32),
        grid=(B, nt),
        in_specs=[pl.BlockSpec((1, C, tt), lambda b, t: (b, 0, t))],
        out_specs=pl.BlockSpec((1, C, 1), lambda b, t: (b, 0, 0)),
        compiler_params=pltpu.CompilerParams(
            dimension_semantics=("parallel", "arbitrary"),
            vmem_limit_bytes=vmem_limit,
        ),
    )(x)

    return pl.pallas_call(
        _scale_kernel,
        out_shape=jax.ShapeDtypeStruct((B, C, T), x.dtype),
        grid=(B, nt),
        in_specs=[
            pl.BlockSpec((1, C, 1), lambda b, t: (b, 0, 0)),
            pl.BlockSpec((C, Cr), lambda b, t: (0, 0)),
            pl.BlockSpec((1, Cr), lambda b, t: (0, 0)),
            pl.BlockSpec((Cr, C), lambda b, t: (0, 0)),
            pl.BlockSpec((1, C), lambda b, t: (0, 0)),
            pl.BlockSpec((1, C, tt), lambda b, t: (b, 0, t)),
        ],
        out_specs=pl.BlockSpec((1, C, tt), lambda b, t: (b, 0, t)),
        compiler_params=pltpu.CompilerParams(
            dimension_semantics=("parallel", "parallel"),
            vmem_limit_bytes=vmem_limit,
        ),
    )(squeeze, w1, b1, w2, b2, x)


# ----------------------------------------------------------------------------
# Pure-JAX reference + deterministic params
# ----------------------------------------------------------------------------
def reference_forward(x, fc1_w, fc1_b, fc2_w, fc2_b):
    squeeze = jnp.mean(x, axis=2)
    h = jnp.maximum(squeeze @ fc1_w + fc1_b, 0.0)
    s = jax.nn.sigmoid(h @ fc2_w + fc2_b)
    return x * s[:, :, None]


def init_params(key, num_channels, reduction_ratio):
    c = num_channels
    cr = num_channels // reduction_ratio
    k1, k2, k3, k4 = jax.random.split(key, 4)
    fc1_w = (0.3 * jax.random.normal(k1, (c, cr))).astype(jnp.float32)
    fc1_b = (0.3 * jax.random.normal(k2, (cr,))).astype(jnp.float32)
    fc2_w = (0.3 * jax.random.normal(k3, (cr, c))).astype(jnp.float32)
    fc2_b = (0.3 * jax.random.normal(k4, (c,))).astype(jnp.float32)
    return fc1_w, fc1_b, fc2_w, fc2_b


# ----------------------------------------------------------------------------
if __name__ == "__main__":
    key = jax.random.PRNGKey(0)
    kx, kp, kx2, kp2, kx3, kp3 = jax.random.split(key, 6)

    # Case 1: lane-aligned T, fused single-kernel path with BB-batched blocks.
    B, C, T, r = 4, 16, 128, 2
    x = jax.random.normal(kx, (B, C, T), dtype=jnp.float32)
    params = init_params(kp, C, r)
    out = jax.block_until_ready(channel_se_layer(x, *params))
    ref = reference_forward(x, *params)
    assert out.shape == (B, C, T)
    assert jnp.allclose(out, ref, atol=1e-4, rtol=1e-4), \
        f"max err {float(jnp.max(jnp.abs(out - ref)))}"

    # Case 2: ragged T (no wrapper-side pad/slice; masked tail store in-kernel).
    B2, C2, T2, r2 = 2, 8, 40, 2
    x2 = jax.random.normal(kx2, (B2, C2, T2), dtype=jnp.float32)
    params2 = init_params(kp2, C2, r2)
    out2 = jax.block_until_ready(channel_se_layer(x2, *params2))
    ref2 = reference_forward(x2, *params2)
    assert out2.shape == (B2, C2, T2)
    assert jnp.allclose(out2, ref2, atol=1e-4, rtol=1e-4), \
        f"max err {float(jnp.max(jnp.abs(out2 - ref2)))}"

    # Case 3: force the two-pass T-tiled fallback (the path taken when one
    # batch row would not fit v7x's 64 MiB VMEM), with a ragged last T tile.
    B3, C3, T3, r3 = 2, 8, 300, 2
    x3 = jax.random.normal(kx3, (B3, C3, T3), dtype=jnp.float32)
    params3 = init_params(kp3, C3, r3)
    out3 = jax.block_until_ready(
        channel_se_layer(x3, *params3, force_tiled=True, t_tile=128))
    ref3 = reference_forward(x3, *params3)
    assert out3.shape == (B3, C3, T3)
    assert jnp.allclose(out3, ref3, atol=1e-4, rtol=1e-4), \
        f"max err {float(jnp.max(jnp.abs(out3 - ref3)))}"

    print("KERNEL_OK")
</pallas_src>

<mosaic_0001>
module attributes {stable_mosaic.version = 11 : i64} {
  func.func @_se_fused_kernel(%arg0: i32, %arg1: memref<2x16x128xf32, #tpu.memory_space<vmem>>, %arg2: memref<16x8xf32, #tpu.memory_space<vmem>>, %arg3: memref<1x8xf32, #tpu.memory_space<vmem>>, %arg4: memref<8x16xf32, #tpu.memory_space<vmem>>, %arg5: memref<1x16xf32, #tpu.memory_space<vmem>>, %arg6: memref<2x16x128xf32, #tpu.memory_space<vmem>>) attributes {dimension_semantics = [#tpu.dimension_semantics<parallel>], iteration_bounds = array<i64: 2>, scalar_prefetch = 0 : i64, scratch_operands = 0 : i64, tpu.core_type = #tpu.core_type<tc>, window_params = [{transform_indices = @transform_0, window_bounds = array<i64: 2, 16, 128>}, {pipeline_mode = #tpu.pipeline_mode<synchronous>, transform_indices = @transform_1, window_bounds = array<i64: 16, 8>}, {pipeline_mode = #tpu.pipeline_mode<synchronous>, transform_indices = @transform_2, window_bounds = array<i64: 1, 8>}, {pipeline_mode = #tpu.pipeline_mode<synchronous>, transform_indices = @transform_3, window_bounds = array<i64: 8, 16>}, {pipeline_mode = #tpu.pipeline_mode<synchronous>, transform_indices = @transform_4, window_bounds = array<i64: 1, 16>}, {transform_indices = @transform_5, window_bounds = array<i64: 2, 16, 128>}]} {
    %c0 = arith.constant 0 : index
    %c0_0 = arith.constant 0 : index
    %c0_1 = arith.constant 0 : index
    %0 = vector.load %arg1[%c0, %c0_0, %c0_1] : memref<2x16x128xf32, #tpu.memory_space<vmem>>, vector<2x16x128xf32>
    %cst = arith.constant dense<0.000000e+00> : vector<2x16xf32>
    %1 = vector.multi_reduction <add>, %0, %cst [2] : vector<2x16x128xf32> to vector<2x16xf32>
    %cst_2 = arith.constant 7.812500e-03 : f32
    %2 = vector.broadcast %cst_2 : f32 to vector<2x16xf32>
    %3 = arith.mulf %1, %2 : vector<2x16xf32>
    %c0_3 = arith.constant 0 : index
    %c0_4 = arith.constant 0 : index
    %4 = vector.load %arg2[%c0_3, %c0_4] : memref<16x8xf32, #tpu.memory_space<vmem>>, vector<16x8xf32>
    %cst_5 = arith.constant dense<0.000000e+00> : vector<2x8xf32>
    %5 = tpu.matmul %3, %4, %cst_5 {dimension_numbers = #tpu.dot_dimension_numbers<[1], [0], [0], [1], [0, 0, 1, 1], [], []>} : vector<2x16xf32>, vector<16x8xf32>, vector<2x8xf32> -> vector<2x8xf32>
    %c0_6 = arith.constant 0 : index
    %c0_7 = arith.constant 0 : index
    %6 = vector.load %arg3[%c0_6, %c0_7] : memref<1x8xf32, #tpu.memory_space<vmem>>, vector<1x8xf32>
    %7 = vector.broadcast %6 : vector<1x8xf32> to vector<2x8xf32>
    %8 = arith.addf %5, %7 : vector<2x8xf32>
    %cst_8 = arith.constant 0.000000e+00 : f32
    %9 = vector.broadcast %cst_8 : f32 to vector<2x8xf32>
    %10 = arith.maximumf %8, %9 : vector<2x8xf32>
    %c0_9 = arith.constant 0 : index
    %c0_10 = arith.constant 0 : index
    %11 = vector.load %arg4[%c0_9, %c0_10] : memref<8x16xf32, #tpu.memory_space<vmem>>, vector<8x16xf32>
    %cst_11 = arith.constant dense<0.000000e+00> : vector<2x16xf32>
    %12 = tpu.matmul %10, %11, %cst_11 {dimension_numbers = #tpu.dot_dimension_numbers<[1], [0], [0], [1], [0, 0, 1, 1], [], []>} : vector<2x8xf32>, vector<8x16xf32>, vector<2x16xf32> -> vector<2x16xf32>
    %c0_12 = arith.constant 0 : index
    %c0_13 = arith.constant 0 : index
    %13 = vector.load %arg5[%c0_12, %c0_13] : memref<1x16xf32, #tpu.memory_space<vmem>>, vector<1x16xf32>
    %14 = vector.broadcast %13 : vector<1x16xf32> to vector<2x16xf32>
    %15 = arith.addf %12, %14 : vector<2x16xf32>
    %16 = arith.negf %15 : vector<2x16xf32>
    %17 = math.exp %16 : vector<2x16xf32>
    %cst_14 = arith.constant 1.000000e+00 : f32
    %18 = vector.broadcast %cst_14 : f32 to vector<2x16xf32>
    %19 = arith.addf %18, %17 : vector<2x16xf32>
    %20 = arith.divf %18, %19 : vector<2x16xf32>
    %c0_15 = arith.constant 0 : index
    %c0_16 = arith.constant 0 : index
    %c0_17 = arith.constant 0 : index
    %21 = vector.load %arg1[%c0_15, %c0_16, %c0_17] : memref<2x16x128xf32, #tpu.memory_space<vmem>>, vector<2x16x128xf32>
    %22 = vector.shape_cast %20 : vector<2x16xf32> to vector<2x16x1xf32>
    %23 = vector.broadcast %22 : vector<2x16x1xf32> to vector<2x16x128xf32>
    %24 = arith.mulf %21, %23 : vector<2x16x128xf32>
    %c0_18 = arith.constant 0 : index
    %c0_19 = arith.constant 0 : index
    %c0_20 = arith.constant 0 : index
    %25 = vector.load %arg6[%c0_18, %c0_19, %c0_20] : memref<2x16x128xf32, #tpu.memory_space<vmem>>, vector<2x16x128xf32>
    tpu.vector_store %arg6[%c0_18, %c0_19, %c0_20], %24 {strides = array<i32>} : memref<2x16x128xf32, #tpu.memory_space<vmem>>, vector<2x16x128xf32>,
    return
  }
  func.func @transform_0(%arg0: i32) -> (i32, i32, i32) {
    %c0_i32 = arith.constant 0 : i32
    %c0_i32_0 = arith.constant 0 : i32
    %c0_i32_1 = arith.constant 0 : i32
    return %arg0, %c0_i32, %c0_i32_0 : i32, i32, i32
  }
  func.func @transform_1(%arg0: i32) -> (i32, i32) {
    %c0_i32 = arith.constant 0 : i32
    %c0_i32_0 = arith.constant 0 : i32
    %c0_i32_1 = arith.constant 0 : i32
    return %c0_i32, %c0_i32_0 : i32, i32
  }
  func.func @transform_2(%arg0: i32) -> (i32, i32) {
    %c0_i32 = arith.constant 0 : i32
    %c0_i32_0 = arith.constant 0 : i32
    %c0_i32_1 = arith.constant 0 : i32
    return %c0_i32, %c0_i32_0 : i32, i32
  }
  func.func @transform_3(%arg0: i32) -> (i32, i32) {
    %c0_i32 = arith.constant 0 : i32
    %c0_i32_0 = arith.constant 0 : i32
    %c0_i32_1 = arith.constant 0 : i32
    return %c0_i32, %c0_i32_0 : i32, i32
  }
  func.func @transform_4(%arg0: i32) -> (i32, i32) {
    %c0_i32 = arith.constant 0 : i32
    %c0_i32_0 = arith.constant 0 : i32
    %c0_i32_1 = arith.constant 0 : i32
    return %c0_i32, %c0_i32_0 : i32, i32
  }
  func.func @transform_5(%arg0: i32) -> (i32, i32, i32) {
    %c0_i32 = arith.constant 0 : i32
    %c0_i32_0 = arith.constant 0 : i32
    %c0_i32_1 = arith.constant 0 : i32
    return %arg0, %c0_i32, %c0_i32_0 : i32, i32, i32
  }
}

</mosaic_0001>

<llo_original>
// kernel: tpu_custom_call.1
$region0: #{tpu_custom_call.1}
  #allocation0 [shape = 'u32[]', space=smem, size = 0x4, offset = 0x4, fixed_abs, tag = 'smem constant byte address 0x4 - core index']
  #allocation1 [shape = 'u32[72,128]{1,0:T(1,128)}', space=vmem, size = 0x9000, scoped, tag = 'internal scratch']
  %s0 = inlined_call_operand.hbm [shape: f32[4,16,128], index: 0, kind: input, shape index: {}]
  %s1 = inlined_call_operand.vmem [shape: f32[16,8], index: 1, kind: input, shape index: {}]
  %s2 = inlined_call_operand.vmem [shape: f32[1,8], index: 2, kind: input, shape index: {}]
  %s3 = inlined_call_operand.vmem [shape: f32[8,16], index: 3, kind: input, shape index: {}]
  %s4 = inlined_call_operand.vmem [shape: f32[1,16], index: 4, kind: input, shape index: {}]
  %s5 = inlined_call_operand.hbm [shape: f32[4,16,128], index: 5, kind: output, shape index: {}]
  %s6 = sld [smem:[#allocation0]]
  $region57: #{tpu_custom_call.1} parent=0
    _
  %s8 = ssub.s32 1, %s6
  %s9 = scalar_select 0, %s8, %s6
  $region1: #{tpu_custom_call.1} parent=0
    #allocation2 [shape = 'u8[32768]{0}', space=vmem, size = 0x8000, scoped, tag = 'input window, operand 0']
    #allocation3 [shape = 's32[2]{0}', space=sflag, size = 0x8, scoped, tag = 'scoped memory for tpu_custom_call.1']
    #allocation4 [shape = 's32[2]{0}', space=sflag, size = 0x8, scoped, tag = 'scoped memory for tpu_custom_call.1']
    #allocation5 [shape = 'u8[32768]{0}', space=vmem, size = 0x8000, scoped, tag = 'output window, operand 0']
    %10 = vsyncpa [#allocation3], 0
    %s11 = scalar_lea.sflag [#allocation3], 1
    %12 = vsyncpa %s11, 0
    %13 = vsyncpa [#allocation4], 0
    %s14 = scalar_lea.sflag [#allocation4], 1
    %15 = vsyncpa %s14, 0
    loop: start=0, step=1, limit=4
    $region2: #{tpu_custom_call.1} parent=1 // loop_pre_header
      _
    $region3: #{tpu_custom_call.1} parent=1 // loop_header
      %s17 = sphi 0, %s21
      %p18 = scmp.ge.s32.totalorder %s17, 4
      %s27 = sphi 0, %s29
      %s30 = sphi 0, %s27
      %s31 = sphi 0, %s30
      %s47 = sphi 0, %s31
      %s51 = sphi 0, %s51
      %s53 = sphi 0, %s51
      %s54 = sphi 0, %s53
      %s68 = sphi 0, %s54
      %s72 = sphi 0, %s72
      %s74 = sphi 0, %s72
      %s75 = sphi 0, %s74
      %s89 = sphi 0, %s75
      %s93 = sphi 0, %s93
      %s95 = sphi 0, %s93
      %s96 = sphi 0, %s95
      %s110 = sphi 0, %s96
      %s114 = sphi 0, %s114
      %s116 = sphi 0, %s114
      %s117 = sphi 0, %s116
      %s131 = sphi 0, %s117
      %s137 = sphi 0, %s139
      %s140 = sphi 0, %s137
      %s141 = sphi 0, %s140
      %s157 = sphi 0, %s141
    $region4: #{tpu_custom_call.1} parent=1 // loop_header_branch
      %20 = sbr.rel (%p18) target = $region8
    $region5: #{tpu_custom_call.1} parent=1 // loop_body
      %s22 = ssub.s32 %s17, 1
      %s23 = ssub.s32 %s17, 2
      %s24 = sadd.s32 %s17, 1
      %s25 = ssub.s32 %s17, %s24
      %p26 = scmp.eq.s32.totalorder %s25, 0
      %s28 = sadd.s32 %s27, 1
      %s29 = scalar_select %p26, %s27, %s28
      %p32 = pneg %p26
      %p33 = scmp.eq.s32.totalorder %s17, 1
      %p34 = por %p32, %p33
      %p35 = scmp.ne.s32.totalorder %s27, %s30
      %p36 = scmp.eq.s32.totalorder %s17, 0
      %p37 = por %p35, %p36
      %p38 = scmp.ne.s32.totalorder %s27, %s30
      %p39 = scmp.eq.s32.totalorder %s22, 1
      %p40 = por %p38, %p39
      %p41 = scmp.ne.s32.totalorder %s30, %s31
      %p42 = scmp.eq.s32.totalorder %s22, 0
      %p43 = por %p41, %p42
      %p44 = scmp.ne.s32.totalorder %s30, %s31
      %p45 = scmp.eq.s32.totalorder %s23, 1
      %p46 = por %p44, %p45
      %p48 = scmp.ne.s32.totalorder %s31, %s47
      %p49 = scmp.eq.s32.totalorder %s23, 0
      %p50 = por %p48, %p49
      %s52 = sadd.s32 %s51, 1
      %p55 = scmp.eq.s32.totalorder %s17, 1
      %p56 = scmp.ne.s32.totalorder %s51, %s53
      %p57 = scmp.eq.s32.totalorder %s17, 0
      %p58 = por %p56, %p57
      %p59 = scmp.ne.s32.totalorder %s51, %s53
      %p60 = scmp.eq.s32.totalorder %s22, 1
      %p61 = por %p59, %p60
      %p62 = scmp.ne.s32.totalorder %s53, %s54
      %p63 = scmp.eq.s32.totalorder %s22, 0
      %p64 = por %p62, %p63
      %p65 = scmp.ne.s32.totalorder %s53, %s54
      %p66 = scmp.eq.s32.totalorder %s23, 1
      %p67 = por %p65, %p66
      %p69 = scmp.ne.s32.totalorder %s54, %s68
      %p70 = scmp.eq.s32.totalorder %s23, 0
      %p71 = por %p69, %p70
      %s73 = sadd.s32 %s72, 1
      %p76 = scmp.eq.s32.totalorder %s17, 1
      %p77 = scmp.ne.s32.totalorder %s72, %s74
      %p78 = scmp.eq.s32.totalorder %s17, 0
      %p79 = por %p77, %p78
      %p80 = scmp.ne.s32.totalorder %s72, %s74
      %p81 = scmp.eq.s32.totalorder %s22, 1
      %p82 = por %p80, %p81
      %p83 = scmp.ne.s32.totalorder %s74, %s75
      %p84 = scmp.eq.s32.totalorder %s22, 0
      %p85 = por %p83, %p84
      %p86 = scmp.ne.s32.totalorder %s74, %s75
      %p87 = scmp.eq.s32.totalorder %s23, 1
      %p88 = por %p86, %p87
      %p90 = scmp.ne.s32.totalorder %s75, %s89
      %p91 = scmp.eq.s32.totalorder %s23, 0
      %p92 = por %p90, %p91
      %s94 = sadd.s32 %s93, 1
      %p97 = scmp.eq.s32.totalorder %s17, 1
      %p98 = scmp.ne.s32.totalorder %s93, %s95
      %p99 = scmp.eq.s32.totalorder %s17, 0
      %p100 = por %p98, %p99
      %p101 = scmp.ne.s32.totalorder %s93, %s95
      %p102 = scmp.eq.s32.totalorder %s22, 1
      %p103 = por %p101, %p102
      %p104 = scmp.ne.s32.totalorder %s95, %s96
      %p105 = scmp.eq.s32.totalorder %s22, 0
      %p106 = por %p104, %p105
      %p107 = scmp.ne.s32.totalorder %s95, %s96
      %p108 = scmp.eq.s32.totalorder %s23, 1
      %p109 = por %p107, %p108
      %p111 = scmp.ne.s32.totalorder %s96, %s110
      %p112 = scmp.eq.s32.totalorder %s23, 0
      %p113 = por %p111, %p112
      %s115 = sadd.s32 %s114, 1
      %p118 = scmp.eq.s32.totalorder %s17, 1
      %p119 = scmp.ne.s32.totalorder %s114, %s116
      %p120 = scmp.eq.s32.totalorder %s17, 0
      %p121 = por %p119, %p120
      %p122 = scmp.ne.s32.totalorder %s114, %s116
      %p123 = scmp.eq.s32.totalorder %s22, 1
      %p124 = por %p122, %p123
      %p125 = scmp.ne.s32.totalorder %s116, %s117
      %p126 = scmp.eq.s32.totalorder %s22, 0
      %p127 = por %p125, %p126
      %p128 = scmp.ne.s32.totalorder %s116, %s117
      %p129 = scmp.eq.s32.totalorder %s23, 1
      %p130 = por %p128, %p129
      %p132 = scmp.ne.s32.totalorder %s117, %s131
      %p133 = scmp.eq.s32.totalorder %s23, 0
      %p134 = por %p132, %p133
      %s135 = ssub.s32 %s17, %s24
      %p136 = scmp.eq.s32.totalorder %s135, 0
      %s138 = sadd.s32 %s137, 1
      %s139 = scalar_select %p136, %s137, %s138
      %p142 = pneg %p136
      %p143 = scmp.eq.s32.totalorder %s17, 1
      %p144 = por %p142, %p143
      %p145 = scmp.ne.s32.totalorder %s137, %s140
      %p146 = scmp.eq.s32.totalorder %s17, 0
      %p147 = por %p145, %p146
      %p148 = scmp.ne.s32.totalorder %s137, %s140
      %p149 = scmp.eq.s32.totalorder %s22, 1
      %p150 = por %p148, %p149
      %p151 = scmp.ne.s32.totalorder %s140, %s141
      %p152 = scmp.eq.s32.totalorder %s22, 0
      %p153 = por %p151, %p152
      %p154 = scmp.ne.s32.totalorder %s140, %s141
      %p155 = scmp.eq.s32.totalorder %s23, 1
      %p156 = por %p154, %p155
      %p158 = scmp.ne.s32.totalorder %s141, %s157
      %p159 = scmp.eq.s32.totalorder %s23, 0
      %p160 = por %p158, %p159
      %p161 = scmp.le.s32.totalorder 1, %s17
      %p162 = scmp.lt.s32.totalorder %s17, 3
      %p163 = pnand %p161, %p162
      %p164 = pneg %p163
      // Predicated region
      $region9: #{tpu_custom_call.1} parent=5 // pred_check
        _
      $region10: #{tpu_custom_call.1} parent=5 // pred_check_branch
        %166 = sbr.rel (%p163) target = $region12
      $region11: #{tpu_custom_call.1} parent=5 // pred_region
        %s167 = ssub.s32 %s17, 1
        // Predicated region
        $region13: #{tpu_custom_call.1} parent=11 // pred_check
          %p168 = pneg %p64
        $region14: #{tpu_custom_call.1} parent=11 // pred_check_branch
          %170 = sbr.rel (%p168) target = $region16
        $region15: #{tpu_custom_call.1} parent=11 // pred_region
          _
        $region16: #{tpu_custom_call.1} parent=11 // pred_fallthru
          _
        // Predicated region
        $region17: #{tpu_custom_call.1} parent=11 // pred_check
          %p171 = pneg %p85
        $region18: #{tpu_custom_call.1} parent=11 // pred_check_branch
          %173 = sbr.rel (%p171) target = $region20
        $region19: #{tpu_custom_call.1} parent=11 // pred_region
          _
        $region20: #{tpu_custom_call.1} parent=11 // pred_fallthru
          _
        // Predicated region
        $region21: #{tpu_custom_call.1} parent=11 // pred_check
          %p174 = pneg %p106
        $region22: #{tpu_custom_call.1} parent=11 // pred_check_branch
          %176 = sbr.rel (%p174) target = $region24
        $region23: #{tpu_custom_call.1} parent=11 // pred_region
          _
        $region24: #{tpu_custom_call.1} parent=11 // pred_fallthru
          _
        // Predicated region
        $region25: #{tpu_custom_call.1} parent=11 // pred_check
          %p177 = pneg %p127
        $region26: #{tpu_custom_call.1} parent=11 // pred_check_branch
          %179 = sbr.rel (%p177) target = $region28
        $region27: #{tpu_custom_call.1} parent=11 // pred_region
          _
        $region28: #{tpu_custom_call.1} parent=11 // pred_fallthru
          _
      $region12: #{tpu_custom_call.1} parent=5 // pred_fallthru
        _
      %p180 = scmp.lt.s32.totalorder %s17, 2
      // Predicated region
      $region29: #{tpu_custom_call.1} parent=5 // pred_check
        %p181 = pneg %p180
      $region30: #{tpu_custom_call.1} parent=5 // pred_check_branch
        %183 = sbr.rel (%p181) target = $region32
      $region31: #{tpu_custom_call.1} parent=5 // pred_region
        // Predicated region
        $region33: #{tpu_custom_call.1} parent=31 // pred_check
          %p184 = pneg %p37
        $region34: #{tpu_custom_call.1} parent=31 // pred_check_branch
          %186 = sbr.rel (%p184) target = $region36
        $region35: #{tpu_custom_call.1} parent=31 // pred_region
          %s187 = sand.u32 %s27, 1
          %s188 = scalar_lea.sflag [#allocation3], %s187
          %s189 = sand.u32 %s27, 1
          %s190 = smul.addr %s189, 32
          %s191 = scalar_lea.vmem [#allocation2], %s190
          %s192 = smul.u32 2, %s17
          %194 = vsyncadd %s188, 0
          %s195 = smul.addr %s192, 2
          %s196 = smul.addr %s195, 8
          %s197 = scalar_lea.hbm %s0, %s196
          %s198 = sshll.u32 %s197, 4
          %s199 = int_to_ptr.hbm [resolvable:$true] %s198
          %s200 = sshll.u32 %s191, 4
          %s201 = int_to_ptr.vmem [resolvable:$true] %s200
          %206 = dma.hbm_to_vmem [thread:$0]  %s199, 512, %s201, %s188, 128, 128, 8
        $region36: #{tpu_custom_call.1} parent=31 // pred_fallthru
          _
      $region32: #{tpu_custom_call.1} parent=5 // pred_fallthru
        _
      %p207 = scmp.le.s32.totalorder 1, %s17
      %p208 = scmp.lt.s32.totalorder %s17, 3
      %p209 = pnand %p207, %p208
      %p210 = pneg %p209
      // Predicated region
      $region37: #{tpu_custom_call.1} parent=5 // pred_check
        _
      $region38: #{tpu_custom_call.1} parent=5 // pred_check_branch
        %212 = sbr.rel (%p209) target = $region40
      $region39: #{tpu_custom_call.1} parent=5 // pred_region
        %s213 = ssub.s32 %s17, 1
        %s214 = sand.u32 %s30, 1
        %s215 = scalar_lea.sflag [#allocation3], %s214
        %s216 = sand.u32 %s30, 1
        %s217 = smul.addr %s216, 32
        %s218 = scalar_lea.vmem [#allocation2], %s217
        // Predicated region
        $region41: #{tpu_custom_call.1} parent=39 // pred_check
          %p219 = pneg %p43
        $region42: #{tpu_custom_call.1} parent=39 // pred_check_branch
          %221 = sbr.rel (%p219) target = $region44
        $region43: #{tpu_custom_call.1} parent=39 // pred_region
          %223 = dma.done %s215, 512
        $region44: #{tpu_custom_call.1} parent=39 // pred_fallthru
          _
        %s224 = sand.u32 %s30, 1
        %s225 = scalar_lea.sflag [#allocation3], %s224
        %s226 = sand.u32 %s30, 1
        %s227 = smul.addr %s226, 32
        %s228 = scalar_lea.vmem [#allocation2], %s227
        %p229 = pneg %p43
        %p230 = pneg %p40
        %p231 = pneg %p64
        %p232 = pneg %p61
        %p233 = pneg %p85
        %p234 = pneg %p82
        %p235 = pneg %p106
        %p236 = pneg %p103
        %p237 = pneg %p127
        %p238 = pneg %p124
        %p239 = pneg %p153
        %p240 = pneg %p150
        %s241 = sand.u32 %s140, 1
        %s242 = scalar_lea.sflag [#allocation4], %s241
        %s243 = sand.u32 %s140, 1
        %s244 = smul.addr %s243, 32
        %s245 = scalar_lea.vmem [#allocation5], %s244
        %s246 = smul.u32 2, %s22
        %s247 = smul.u32 2, %s22
        %v248 = vld [vmem:[%s218] sm:$0xff]
        %v249 = vld [vmem:[%s218 + $0x8] sm:$0xff]
        %v250 = vld [vmem:[%s218 + $0x10] sm:$0xff]
        %v251 = vld [vmem:[%s218 + $0x18] sm:$0xff]
        %252 = vadd.xlane.f32.xlu0 %v248
        %v253 = vpop.xlane.xlu0 %252
        %254 = vadd.xlane.f32.xlu0 %v249
        %v255 = vpop.xlane.xlu0 %254
        %256 = vadd.xlane.f32.xlu0 %v250
        %v257 = vpop.xlane.xlu0 %256
        %258 = vadd.xlane.f32.xlu0 %v251
        %v259 = vpop.xlane.xlu0 %258
        %v260 = vmul.f32 %v253, 0.0078125
        %v261 = vmul.f32 %v255, 0.0078125
        %v262 = vmul.f32 %v257, 0.0078125
        %v263 = vmul.f32 %v259, 0.0078125
        %v264 = vld [vmem:[%s1] sm:$0xff]
        %v265 = vld [vmem:[%s1 + $0x8] sm:$0xff]
        %v266 = vld [vmem:[%s2] sm:$0x1]
        %v268 = vperm.slane %v266, 0
        %v274 = vlaneseq
        %v275 = vand.u32 %v274, 127
        %v276 = vperm.slane %v260, %v275
        %v277 = vadd.s32 %v275, 4294967288
        %v278 = vperm.slane %v261, %v277
        %vm279 = vcmask 130112
        %v280 = vsel %vm279, %v278, %v276
        %v281 = vperm.slane %v262, %v275
        %v282 = vperm.slane %v263, %v277
        %v283 = vsel %vm279, %v282, %v281
        %vm284 = vcmask 1041409
        %v285 = vsel %vm284, %v283, %v280
        %vm286 = vcmask 130048
        %v287 = vsel %vm286, %v285, 0
        %289 = vmatpush.msra.mxu0 0.0
        %290 = vmatpush.msra.mxu0 0.0
        %291 = vmatpush.msra.mxu0 0.0
        %292 = vmatpush.msra.mxu0 0.0
        %293 = vmatpush.msra.mxu0 0.0
        %294 = vmatpush.msra.mxu0 0.0
        %295 = vmatpush.msra.mxu0 0.0
        %296 = vmatpush.msra.mxu0 0.0
        %297 = vmatpush.msra.mxu0 0.0
        %298 = vmatpush.msra.mxu0 0.0
        %299 = vmatpush.msra.mxu0 0.0
        %300 = vmatpush.msra.mxu0 0.0
        %301 = vmatpush.msra.mxu0 0.0
        %302 = vmatpush.msra.mxu0 0.0
        %303 = vmatpush.msra.mxu0 %v265
        %304 = vmatpush.msra.mxu0 %v264
        %305 = vmatmul.f32.gmra.mxu0 %v287
        %v306 = vpop.f32.mrf.mxu0
        %v307 = vadd.f32 %v268, %v306
        %308 = vdwg.mxu0
        %v309 = vmax.f32 %v307, 0.0
        %v310 = vld [vmem:[%s3] sm:$0xff]
        %v311 = vld [vmem:[%s4] sm:$0x1]
        %v313 = vperm.slane %v311, 0
        %vm315 = vcmask 64512
        %v317 = vsel %vm315, %v309, 0
        %319 = vmatpush.msra.mxu0 0.0
        %320 = vmatpush.msra.mxu0 0.0
        %321 = vmatpush.msra.mxu0 0.0
        %322 = vmatpush.msra.mxu0 0.0
        %323 = vmatpush.msra.mxu0 0.0
        %324 = vmatpush.msra.mxu0 0.0
        %325 = vmatpush.msra.mxu0 0.0
        %326 = vmatpush.msra.mxu0 0.0
        %327 = vmatpush.msra.mxu0 0.0
        %328 = vmatpush.msra.mxu0 0.0
        %329 = vmatpush.msra.mxu0 0.0
        %330 = vmatpush.msra.mxu0 0.0
        %331 = vmatpush.msra.mxu0 0.0
        %332 = vmatpush.msra.mxu0 0.0
        %333 = vmatpush.msra.mxu0 0.0
        %334 = vmatpush.msra.mxu0 %v310
        %335 = vmatmul.f32.gmra.mxu0 %v317
        %v336 = vpop.f32.mrf.mxu0
        %v337 = vadd.f32 %v313, %v336
        %338 = vdwg.mxu0
        %v339 = vxor.u32 %v337, 2147483648
        %v340 = vmul.f32 %v339, 1.442695
        %v341 = vpow.pop %v340
        %v342 = vadd.f32 %v341, 1.0
        %v343 = vrcp.pop %v342
        %v344 = vmul.f32 %v342, %v343
        %v345 = vsub.f32 1.0, %v344
        %v346 = vmul.f32 %v343, %v345
        %v347 = vadd.f32 %v343, %v346
        %vm348 = vweird.f32 %v342
        %vm349 = vweird.f32 %v343
        %vm350 = vmor %vm348, %vm349
        %v351 = vsel %vm350, %v343, %v347
        %v352 = vand.u32 2147483647, %v342
        %vm353 = vcmp.eq.f32.partialorder %v352, 8.507059e+37
        %v354 = vand.u32 %v342, 2147483648
        %v355 = vor.u32 1.1754944e-38, %v354
        %v356 = vsel %vm353, %v355, %v351
        %v357 = vmul.f32 1.0, %v356
        %v358 = vperm.slane %v357, 0
        %v359 = vlaneseq
        %v360 = vshrl.u32 %v359, 7
        %362 = vset.pattern.permute.xlu0 %v360
        %363 = vperm.xlu0 %362, %v358
        %v364 = vpop.permute.xlu0 %363
        %v365 = vlaneseq
        %v366 = vshrl.u32 %v365, 7
        %v367 = vadd.s32 %v366, 8
        %368 = vset.pattern.permute.xlu0 %v367
        %369 = vperm.xlu0 %368, %v358
        %v370 = vpop.permute.xlu0 %369
        %v371 = vperm.slane %v357, 1
        %v372 = vlaneseq
        %v373 = vshrl.u32 %v372, 7
        %375 = vset.pattern.permute.xlu0 %v373
        %376 = vperm.xlu0 %375, %v371
        %v377 = vpop.permute.xlu0 %376
        %v378 = vlaneseq
        %v379 = vshrl.u32 %v378, 7
        %v380 = vadd.s32 %v379, 8
        %381 = vset.pattern.permute.xlu0 %v380
        %382 = vperm.xlu0 %381, %v371
        %v383 = vpop.permute.xlu0 %382
        %v384 = vmul.f32 %v248, %v364
        %v385 = vmul.f32 %v249, %v370
        %v386 = vmul.f32 %v250, %v377
        %v387 = vmul.f32 %v251, %v383
        %388 = vst [vmem:[%s245] sm:$0xff] %v384
        %389 = vst [vmem:[%s245 + $0x8] sm:$0xff] %v385
        %390 = vst [vmem:[%s245 + $0x10] sm:$0xff] %v386
        %391 = vst [vmem:[%s245 + $0x18] sm:$0xff] %v387
        %s392 = sand.u32 %s140, 1
        %s393 = scalar_lea.sflag [#allocation4], %s392
        %s394 = sand.u32 %s140, 1
        %s395 = smul.addr %s394, 32
        %s396 = scalar_lea.vmem [#allocation5], %s395
        // Predicated region
        $region45: #{tpu_custom_call.1} parent=39 // pred_check
          %p397 = pneg %p150
        $region46: #{tpu_custom_call.1} parent=39 // pred_check_branch
          %399 = sbr.rel (%p397) target = $region48
        $region47: #{tpu_custom_call.1} parent=39 // pred_region
          %s400 = smul.u32 2, %s22
          %402 = vsyncadd %s393, 0
          %s403 = smul.addr %s400, 2
          %s404 = smul.addr %s403, 8
          %s405 = scalar_lea.hbm %s5, %s404
          %s406 = sshll.u32 %s396, 4
          %s407 = int_to_ptr.vmem [resolvable:$true] %s406
          %s408 = sshll.u32 %s405, 4
          %s409 = int_to_ptr.hbm [resolvable:$true] %s408
          %414 = dma.vmem_to_hbm [thread:$0]  %s407, 512, %s409, %s393, 128, 128, 8
        $region48: #{tpu_custom_call.1} parent=39 // pred_fallthru
          _
      $region40: #{tpu_custom_call.1} parent=5 // pred_fallthru
        _
      %p415 = scmp.le.s32.totalorder 2, %s17
      // Predicated region
      $region49: #{tpu_custom_call.1} parent=5 // pred_check
        %p416 = pneg %p415
      $region50: #{tpu_custom_call.1} parent=5 // pred_check_branch
        %418 = sbr.rel (%p416) target = $region52
      $region51: #{tpu_custom_call.1} parent=5 // pred_region
        %s419 = ssub.s32 %s17, 2
        // Predicated region
        $region53: #{tpu_custom_call.1} parent=51 // pred_check
          %p420 = pneg %p156
        $region54: #{tpu_custom_call.1} parent=51 // pred_check_branch
          %422 = sbr.rel (%p420) target = $region56
        $region55: #{tpu_custom_call.1} parent=51 // pred_region
          %s423 = sand.u32 %s141, 1
          %s424 = scalar_lea.sflag [#allocation4], %s423
          %s425 = sand.u32 %s141, 1
          %s426 = smul.addr %s425, 32
          %s427 = scalar_lea.vmem [#allocation5], %s426
          %429 = dma.done %s424, 512
        $region56: #{tpu_custom_call.1} parent=51 // pred_fallthru
          _
      $region52: #{tpu_custom_call.1} parent=5 // pred_fallthru
        _
    $region6: #{tpu_custom_call.1} parent=1 // loop_footer
      %s21 = sadd.s32 1, %s17
    $region7: #{tpu_custom_call.1} parent=1 // loop_footer_branch
      %16 = sbr.rel target = $region3
    $region8: #{tpu_custom_call.1} parent=1 // loop_exit
      _
    %430 = vsyncpa [#allocation3], 1
    %s431 = scalar_lea.sflag [#allocation3], 1
    %432 = vsyncpa %s431, 1
    %433 = vsyncpa [#allocation4], 1
    %s434 = scalar_lea.sflag [#allocation4], 1
    %435 = vsyncpa %s434, 1

</llo_original>
